<compile_context>
chip_gen: v7x
topology: tpu7x:2x2x1
jax: 0.10.0
libtpu: 0.0.40
codegen_flags: <defaults>
</compile_context>

<pallas_src>
import functools

import jax
import jax.numpy as jnp
import numpy as np
from jax.experimental import pallas as pl
from jax.experimental.pallas import tpu as pltpu

LANES = 128  # pad K / Cout to the vreg lane width


def _round_up(v, m):
    return (v + m - 1) // m * m


def _im2col_conv1(x):
    """x: (N, C, H, W) -> (N, Ho, Wo, C*9) patches for a 3x3 / stride-2 / pad-1 conv.

    K is ordered (c, dy, dx) to match w.reshape(Cout, C*9)."""
    n, c, h, w = x.shape
    ho = (h + 2 - 3) // 2 + 1
    wo = (w + 2 - 3) // 2 + 1
    xp = jnp.pad(x, ((0, 0), (0, 0), (1, 1), (1, 1)))
    cols = []
    for dy in range(3):
        for dx in range(3):
            cols.append(xp[:, :, dy:dy + 2 * (ho - 1) + 1:2, dx:dx + 2 * (wo - 1) + 1:2])
    p = jnp.stack(cols, axis=2).reshape(n, c, 3, 3, ho, wo)
    p = jnp.transpose(p, (0, 4, 5, 1, 2, 3)).reshape(n, ho, wo, c * 9)
    return p, ho, wo


def _conv2_layout(ho1, wo1, ho2, wo2):
    """Row layout that conv1's GEMM writes its activation into so that EVERY 3x3/stride-2
    tap of conv2 is a contiguous row window of that activation.

    conv1's output rows are placed as four (row-parity x col-parity) planes, each with a
    one-slot zero guard row/column at the top/left (= conv2's zero padding).  The value
    needed by conv2 output (yo, xo) for tap (dy, dx) then sits at
        plane_offset(dy,dx) + base(dy,dx) + yo*(wo2+1) + xo
    i.e. one contiguous window of `win` rows per tap, at a static offset.

    Returns (idx, r_img, taps, qs, win):
      idx   : (r_img,) int32, layout row -> conv1 flat output row (ho1*wo1 == zero row)
      r_img : layout rows per image (multiple of 16)
      taps  : list of (tap_index, plane_offset, base) for the 9 conv2 taps
      qs    : guarded row stride (= wo2 + 1)
      win   : conv2 accumulator rows kept per image (multiple of 8)
    """
    qs = wo2 + 1
    prow = ho2 + 1
    pl_sz = prow * qs
    win = _round_up((ho2 - 1) * qs + wo2, 8)
    base_max = qs + 1
    r_img = _round_up(3 * pl_sz + base_max + win, 16)

    zero_row = ho1 * wo1
    idx = np.full((r_img,), zero_row, dtype=np.int32)
    planes = [(0, 0), (0, 1), (1, 0), (1, 1)]   # (row parity, col parity): EE, EO, OE, OO
    for p, (rp, cp) in enumerate(planes):
        for i in range(1, prow):
            for j in range(1, qs):
                y1 = 2 * (i - 1) + rp
                x1 = 2 * (j - 1) + cp
                idx[p * pl_sz + i * qs + j] = y1 * wo1 + x1

    plane_of = {pc: k for k, pc in enumerate(planes)}
    taps = []
    for dy in range(3):
        for dx in range(3):
            rp, cp = (dy + 1) % 2, (dx + 1) % 2
            base = (0 if dy == 0 else qs) + (0 if dx == 0 else 1)
            taps.append((dy * 3 + dx, plane_of[(rp, cp)] * pl_sz, base))
    return idx, r_img, taps, qs, win


def _make_fused_kernel(b_tile, r_img, taps, win):
    """conv1 + conv2 (+ReLU, biases folded via an augmented ones lane), B_TILE images/step."""

    def kernel(a_ref, w1_ref, w2_ref, o_ref, hb_ref):
        # ---- conv1: ONE (B_TILE*r_img, 128) @ (128, 128) bf16 GEMM, f32 accumulate. ----
        # The bias rides in the all-ones K column, so the layout's zero guard rows stay
        # exactly zero after ReLU: no scratch zero-init and no scatter are needed.
        h = jnp.dot(a_ref[...], w1_ref[...], preferred_element_type=jnp.float32)
        # One cast, one dense (sublane/lane aligned, unmasked) store of the activation;
        # conv2 reads bf16 windows straight out of this scratch.
        hb_ref[...] = jnp.maximum(h, 0.0).astype(jnp.bfloat16)

        # ---- conv2: per image, 9 taps == 9 contiguous-window MXU dots, pure sum. ----
        # b2 is folded into tap (1,1) via the ones lane; ReLU is the only VPU op, so the
        # tap dots can accumulate in the MXU result buffer on v7x.
        for b in range(b_tile):                      # static unroll: all offsets constant
            img = b * r_img
            acc = None
            for (t, poff, base) in taps:
                off = img + poff + base
                d = jnp.dot(hb_ref[off:off + win, :], w2_ref[t],
                            preferred_element_type=jnp.float32)
                acc = d if acc is None else acc + d
            # Dense, unmasked (multiple-of-8 row) store; the invalid guard-column rows are
            # stripped by a free slice in the wrapper instead of masked sub-sublane stores.
            o_ref[b * win:(b + 1) * win, :] = jnp.maximum(acc, 0.0)

    return kernel


def fused_backbone_forward(x, w1, b1, w2, b2, *, b_tile=8):
    """Fused conv(3x3,s2,p1)+ReLU -> conv(3x3,s2,p1)+ReLU.  NCHW in / NCHW out."""
    n, cin, _, _ = x.shape
    c1, c2 = w1.shape[0], w2.shape[0]
    k1 = cin * 9
    assert k1 + 1 <= LANES and c1 + 1 <= LANES and c2 <= LANES

    # ---- conv1 im2col (XLA side) + placement into the conv2-friendly guarded layout. ----
    # TODO(synk): conv1's im2col could also move in-kernel (DMA the raw ~4 KiB image and
    # build the taps with the same parity-window trick); at Cin=4 that needs lane-scattered
    # writes, so it stays on the XLA side for now.
    patches, ho1, wo1 = _im2col_conv1(x)
    assert ho1 % 2 == 0 and wo1 % 2 == 0, "input spatial size must be a multiple of 4"
    ho2 = (ho1 - 1) // 2 + 1
    wo2 = (wo1 - 1) // 2 + 1
    idx, r_img, taps, qs, win = _conv2_layout(ho1, wo1, ho2, wo2)

    # patch rows + an all-ones bias column + an all-zero row that guard/tail positions map
    # to, gathered straight into the guarded parity layout (one take, one pad, one cast).
    pat = jnp.concatenate(
        [patches.reshape(n, ho1 * wo1, k1),
         jnp.ones((n, ho1 * wo1, 1), patches.dtype)], axis=-1)
    pat = jnp.concatenate([pat, jnp.zeros((n, 1, k1 + 1), pat.dtype)], axis=1)
    lay = jnp.take(pat, jnp.asarray(idx), axis=1)                    # (N, r_img, k1+1)
    lay = jnp.pad(lay, ((0, 0), (0, 0), (0, LANES - (k1 + 1)))).astype(jnp.bfloat16)

    # ---- batch tiling: B_TILE images per grid step (amortizes the ~600-cycle step
    # overhead and fills the MXU M dimension).  For production batches pick b_tile so the
    # grid extent stays a multiple of 2 (the "parallel" axis feeds v7x's two TensorCores).
    b_tile = max(1, min(b_tile, n))
    n_pad = _round_up(n, b_tile)
    if n_pad != n:
        lay = jnp.pad(lay, ((0, n_pad - n), (0, 0), (0, 0)))   # zero images -> zero output
    lay2d = lay.reshape(n_pad * r_img, LANES)

    # ---- augmented, padded, bf16 weights (biases folded; padded lanes stay exactly 0). ----
    w1m = jnp.zeros((LANES, LANES), jnp.float32)
    w1m = w1m.at[:k1, :c1].set(w1.reshape(c1, k1).T)
    w1m = w1m.at[k1, :c1].set(b1)            # bias row, driven by the ones column
    w1m = w1m.at[k1, c1].set(1.0)            # pass the ones column through to lane c1
    w1m = w1m.astype(jnp.bfloat16)

    w2m = jnp.zeros((9, LANES, LANES), jnp.float32)
    w2m = w2m.at[:, :c1, :c2].set(jnp.transpose(w2, (2, 3, 1, 0)).reshape(9, c1, c2))
    w2m = w2m.at[4, c1, :c2].set(b2)         # tap (1,1) reads the ones lane exactly once
    w2m = w2m.astype(jnp.bfloat16)

    n_tiles = n_pad // b_tile
    m_step = b_tile * r_img
    o_rows = b_tile * win

    out2d = pl.pallas_call(
        _make_fused_kernel(b_tile, r_img, taps, win),
        out_shape=jax.ShapeDtypeStruct((n_tiles * o_rows, LANES), jnp.float32),
        grid_spec=pltpu.PrefetchScalarGridSpec(
            num_scalar_prefetch=0,
            grid=(n_tiles,),                                        # one batch tile per step
            in_specs=[
                pl.BlockSpec((m_step, LANES), lambda i: (i, 0)),         # patch layout
                pl.BlockSpec((LANES, LANES), lambda i: (0, 0)),          # w1 (resident)
                pl.BlockSpec((9, LANES, LANES), lambda i: (0, 0, 0)),    # w2 taps (resident)
            ],
            out_specs=pl.BlockSpec((o_rows, LANES), lambda i: (i, 0)),
            scratch_shapes=[pltpu.VMEM((m_step, LANES), jnp.bfloat16)],  # conv1 act (bf16)
        ),
        compiler_params=pltpu.CompilerParams(
            dimension_semantics=("parallel",)),          # shard batch tiles across TCs
    )(lay2d, w1m, w2m)

    # strip guard-column rows and padded lanes (cheap XLA slice), emit NCHW.
    out = out2d.reshape(n_pad, win, LANES)[:n, :ho2 * qs, :]
    out = out.reshape(n, ho2, qs, LANES)[:, :, :wo2, :c2]
    return jnp.transpose(out, (0, 3, 1, 2))


class EmbeddedBackbonePallas:
    """JAX/Pallas equivalent of the ProtoPNet EmbeddedBackbone wrapper."""

    def __init__(self, input_channels=(4, 16, 16), key=jax.random.PRNGKey(0)):
        self.input_channels = tuple(input_channels)
        cin = self.input_channels[0]
        k1, k2, k3, k4 = jax.random.split(key, 4)
        c1, c2 = 32, 64
        self.w1 = jax.random.normal(k1, (c1, cin, 3, 3), jnp.float32) * (2.0 / (cin * 9)) ** 0.5
        self.b1 = jax.random.normal(k2, (c1,), jnp.float32) * 0.01
        self.w2 = jax.random.normal(k3, (c2, c1, 3, 3), jnp.float32) * (2.0 / (c1 * 9)) ** 0.5
        self.b2 = jax.random.normal(k4, (c2,), jnp.float32) * 0.01
        # Mirror EmbeddedBackbone.__latent_dimension (dummy forward, drop batch dim).
        dummy = jax.random.normal(jax.random.PRNGKey(1), (1, *self.input_channels), jnp.float32)
        self.latent_dimension = tuple(self.forward(dummy).shape[1:])

    @functools.partial(jax.jit, static_argnums=0)
    def forward(self, x):
        return fused_backbone_forward(x, self.w1, self.b1, self.w2, self.b2)

    def __call__(self, x):
        return self.forward(x)


def _reference_forward(model, x):
    """Pure-JAX reference mirroring the kernel's dtype policy (bf16 operands / folded bf16
    bias, f32 accumulation)."""
    def conv(h, w, b):
        y = jax.lax.conv_general_dilated(
            h.astype(jnp.bfloat16), w.astype(jnp.bfloat16),
            window_strides=(2, 2), padding=((1, 1), (1, 1)),
            dimension_numbers=("NCHW", "OIHW", "NCHW"),
            preferred_element_type=jnp.float32)
        b = b.astype(jnp.bfloat16).astype(jnp.float32)   # kernel folds bias as a bf16 GEMM row
        return jnp.maximum(y + b[None, :, None, None], 0.0)
    return conv(conv(x, model.w1, model.b1), model.w2, model.b2)


if __name__ == "__main__":
    key = jax.random.PRNGKey(0)
    kx, kp = jax.random.split(key)
    # Small shapes consistent with the module: batch=2, channels=4, spatial=16x16.
    x = jax.random.normal(kx, (2, 4, 16, 16), jnp.float32)

    model = EmbeddedBackbonePallas(input_channels=(4, 16, 16), key=kp)
    out = jax.block_until_ready(model(x))

    ref = jax.block_until_ready(_reference_forward(model, x))
    assert out.shape == (2, 64, 4, 4), out.shape
    assert model.latent_dimension == (64, 4, 4), model.latent_dimension
    max_err = float(jnp.max(jnp.abs(out - ref)))
    assert jnp.allclose(out, ref, atol=2e-3, rtol=2e-3), \
        f"mismatch vs reference conv (max err {max_err})"

    print("KERNEL_OK")
</pallas_src>

<mosaic_0001>
module attributes {stable_mosaic.version = 11 : i64} {
  func.func @kernel(%arg0: i32, %arg1: memref<112x128xbf16, #tpu.memory_space<vmem>>, %arg2: memref<128x128xbf16, #tpu.memory_space<vmem>>, %arg3: memref<9x128x128xbf16, #tpu.memory_space<vmem>>, %arg4: memref<24x128xf32, #tpu.memory_space<vmem>>, %arg5: memref<112x128xbf16, #tpu.memory_space<vmem>>) attributes {dimension_semantics = [#tpu.dimension_semantics<parallel>], iteration_bounds = array<i64: 1>, scalar_prefetch = 0 : i64, scratch_operands = 1 : i64, tpu.core_type = #tpu.core_type<tc>, window_params = [{transform_indices = @transform_0, window_bounds = array<i64: 112, 128>}, {pipeline_mode = #tpu.pipeline_mode<synchronous>, transform_indices = @transform_1, window_bounds = array<i64: 128, 128>}, {pipeline_mode = #tpu.pipeline_mode<synchronous>, transform_indices = @transform_2, window_bounds = array<i64: 9, 128, 128>}, {transform_indices = @transform_3, window_bounds = array<i64: 24, 128>}]} {
    %c0 = arith.constant 0 : index
    %c0_0 = arith.constant 0 : index
    %0 = vector.load %arg1[%c0, %c0_0] : memref<112x128xbf16, #tpu.memory_space<vmem>>, vector<112x128xbf16>
    %c0_1 = arith.constant 0 : index
    %c0_2 = arith.constant 0 : index
    %1 = vector.load %arg2[%c0_1, %c0_2] : memref<128x128xbf16, #tpu.memory_space<vmem>>, vector<128x128xbf16>
    %cst = arith.constant dense<0.000000e+00> : vector<112x128xf32>
    %2 = tpu.matmul %0, %1, %cst {dimension_numbers = #tpu.dot_dimension_numbers<[1], [0], [0], [1], [0, 0, 1, 1], [], []>} : vector<112x128xbf16>, vector<128x128xbf16>, vector<112x128xf32> -> vector<112x128xf32>
    %cst_3 = arith.constant 0.000000e+00 : f32
    %3 = vector.broadcast %cst_3 : f32 to vector<112x128xf32>
    %4 = arith.maximumf %2, %3 : vector<112x128xf32>
    %5 = arith.truncf %4 : vector<112x128xf32> to vector<112x128xbf16>
    %c0_4 = arith.constant 0 : index
    %c0_5 = arith.constant 0 : index
    %6 = vector.load %arg5[%c0_4, %c0_5] : memref<112x128xbf16, #tpu.memory_space<vmem>>, vector<112x128xbf16>
    tpu.vector_store %arg5[%c0_4, %c0_5], %5 {strides = array<i32>} : memref<112x128xbf16, #tpu.memory_space<vmem>>, vector<112x128xbf16>,
    %c75 = arith.constant 75 : index
    %c0_6 = arith.constant 0 : index
    %7 = vector.load %arg5[%c75, %c0_6] : memref<112x128xbf16, #tpu.memory_space<vmem>>, vector<24x128xbf16>
    %c0_7 = arith.constant 0 : index
    %c0_8 = arith.constant 0 : index
    %c0_9 = arith.constant 0 : index
    %8 = vector.load %arg3[%c0_7, %c0_8, %c0_9] : memref<9x128x128xbf16, #tpu.memory_space<vmem>>, vector<1x128x128xbf16>
    %9 = vector.shape_cast %8 : vector<1x128x128xbf16> to vector<128x128xbf16>
    %cst_10 = arith.constant dense<0.000000e+00> : vector<24x128xf32>
    %10 = tpu.matmul %7, %9, %cst_10 {dimension_numbers = #tpu.dot_dimension_numbers<[1], [0], [0], [1], [0, 0, 1, 1], [], []>} : vector<24x128xbf16>, vector<128x128xbf16>, vector<24x128xf32> -> vector<24x128xf32>
    %c51 = arith.constant 51 : index
    %c0_11 = arith.constant 0 : index
    %11 = vector.load %arg5[%c51, %c0_11] : memref<112x128xbf16, #tpu.memory_space<vmem>>, vector<24x128xbf16>
    %c1 = arith.constant 1 : index
    %c0_12 = arith.constant 0 : index
    %c0_13 = arith.constant 0 : index
    %12 = vector.load %arg3[%c1, %c0_12, %c0_13] : memref<9x128x128xbf16, #tpu.memory_space<vmem>>, vector<1x128x128xbf16>
    %13 = vector.shape_cast %12 : vector<1x128x128xbf16> to vector<128x128xbf16>
    %cst_14 = arith.constant dense<0.000000e+00> : vector<24x128xf32>
    %14 = tpu.matmul %11, %13, %cst_14 {dimension_numbers = #tpu.dot_dimension_numbers<[1], [0], [0], [1], [0, 0, 1, 1], [], []>} : vector<24x128xbf16>, vector<128x128xbf16>, vector<24x128xf32> -> vector<24x128xf32>
    %15 = arith.addf %10, %14 : vector<24x128xf32>
    %c76 = arith.constant 76 : index
    %c0_15 = arith.constant 0 : index
    %16 = vector.load %arg5[%c76, %c0_15] : memref<112x128xbf16, #tpu.memory_space<vmem>>, vector<24x128xbf16>
    %c2 = arith.constant 2 : index
    %c0_16 = arith.constant 0 : index
    %c0_17 = arith.constant 0 : index
    %17 = vector.load %arg3[%c2, %c0_16, %c0_17] : memref<9x128x128xbf16, #tpu.memory_space<vmem>>, vector<1x128x128xbf16>
    %18 = vector.shape_cast %17 : vector<1x128x128xbf16> to vector<128x128xbf16>
    %cst_18 = arith.constant dense<0.000000e+00> : vector<24x128xf32>
    %19 = tpu.matmul %16, %18, %cst_18 {dimension_numbers = #tpu.dot_dimension_numbers<[1], [0], [0], [1], [0, 0, 1, 1], [], []>} : vector<24x128xbf16>, vector<128x128xbf16>, vector<24x128xf32> -> vector<24x128xf32>
    %20 = arith.addf %15, %19 : vector<24x128xf32>
    %c30 = arith.constant 30 : index
    %c0_19 = arith.constant 0 : index
    %21 = vector.load %arg5[%c30, %c0_19] : memref<112x128xbf16, #tpu.memory_space<vmem>>, vector<24x128xbf16>
    %c3 = arith.constant 3 : index
    %c0_20 = arith.constant 0 : index
    %c0_21 = arith.constant 0 : index
    %22 = vector.load %arg3[%c3, %c0_20, %c0_21] : memref<9x128x128xbf16, #tpu.memory_space<vmem>>, vector<1x128x128xbf16>
    %23 = vector.shape_cast %22 : vector<1x128x128xbf16> to vector<128x128xbf16>
    %cst_22 = arith.constant dense<0.000000e+00> : vector<24x128xf32>
    %24 = tpu.matmul %21, %23, %cst_22 {dimension_numbers = #tpu.dot_dimension_numbers<[1], [0], [0], [1], [0, 0, 1, 1], [], []>} : vector<24x128xbf16>, vector<128x128xbf16>, vector<24x128xf32> -> vector<24x128xf32>
    %25 = arith.addf %20, %24 : vector<24x128xf32>
    %c6 = arith.constant 6 : index
    %c0_23 = arith.constant 0 : index
    %26 = vector.load %arg5[%c6, %c0_23] : memref<112x128xbf16, #tpu.memory_space<vmem>>, vector<24x128xbf16>
    %c4 = arith.constant 4 : index
    %c0_24 = arith.constant 0 : index
    %c0_25 = arith.constant 0 : index
    %27 = vector.load %arg3[%c4, %c0_24, %c0_25] : memref<9x128x128xbf16, #tpu.memory_space<vmem>>, vector<1x128x128xbf16>
    %28 = vector.shape_cast %27 : vector<1x128x128xbf16> to vector<128x128xbf16>
    %cst_26 = arith.constant dense<0.000000e+00> : vector<24x128xf32>
    %29 = tpu.matmul %26, %28, %cst_26 {dimension_numbers = #tpu.dot_dimension_numbers<[1], [0], [0], [1], [0, 0, 1, 1], [], []>} : vector<24x128xbf16>, vector<128x128xbf16>, vector<24x128xf32> -> vector<24x128xf32>
    %30 = arith.addf %25, %29 : vector<24x128xf32>
    %c31 = arith.constant 31 : index
    %c0_27 = arith.constant 0 : index
    %31 = vector.load %arg5[%c31, %c0_27] : memref<112x128xbf16, #tpu.memory_space<vmem>>, vector<24x128xbf16>
    %c5 = arith.constant 5 : index
    %c0_28 = arith.constant 0 : index
    %c0_29 = arith.constant 0 : index
    %32 = vector.load %arg3[%c5, %c0_28, %c0_29] : memref<9x128x128xbf16, #tpu.memory_space<vmem>>, vector<1x128x128xbf16>
    %33 = vector.shape_cast %32 : vector<1x128x128xbf16> to vector<128x128xbf16>
    %cst_30 = arith.constant dense<0.000000e+00> : vector<24x128xf32>
    %34 = tpu.matmul %31, %33, %cst_30 {dimension_numbers = #tpu.dot_dimension_numbers<[1], [0], [0], [1], [0, 0, 1, 1], [], []>} : vector<24x128xbf16>, vector<128x128xbf16>, vector<24x128xf32> -> vector<24x128xf32>
    %35 = arith.addf %30, %34 : vector<24x128xf32>
    %c80 = arith.constant 80 : index
    %c0_31 = arith.constant 0 : index
    %36 = vector.load %arg5[%c80, %c0_31] : memref<112x128xbf16, #tpu.memory_space<vmem>>, vector<24x128xbf16>
    %c6_32 = arith.constant 6 : index
    %c0_33 = arith.constant 0 : index
    %c0_34 = arith.constant 0 : index
    %37 = vector.load %arg3[%c6_32, %c0_33, %c0_34] : memref<9x128x128xbf16, #tpu.memory_space<vmem>>, vector<1x128x128xbf16>
    %38 = vector.shape_cast %37 : vector<1x128x128xbf16> to vector<128x128xbf16>
    %cst_35 = arith.constant dense<0.000000e+00> : vector<24x128xf32>
    %39 = tpu.matmul %36, %38, %cst_35 {dimension_numbers = #tpu.dot_dimension_numbers<[1], [0], [0], [1], [0, 0, 1, 1], [], []>} : vector<24x128xbf16>, vector<128x128xbf16>, vector<24x128xf32> -> vector<24x128xf32>
    %40 = arith.addf %35, %39 : vector<24x128xf32>
    %c56 = arith.constant 56 : index
    %c0_36 = arith.constant 0 : index
    %41 = vector.load %arg5[%c56, %c0_36] : memref<112x128xbf16, #tpu.memory_space<vmem>>, vector<24x128xbf16>
    %c7 = arith.constant 7 : index
    %c0_37 = arith.constant 0 : index
    %c0_38 = arith.constant 0 : index
    %42 = vector.load %arg3[%c7, %c0_37, %c0_38] : memref<9x128x128xbf16, #tpu.memory_space<vmem>>, vector<1x128x128xbf16>
    %43 = vector.shape_cast %42 : vector<1x128x128xbf16> to vector<128x128xbf16>
    %cst_39 = arith.constant dense<0.000000e+00> : vector<24x128xf32>
    %44 = tpu.matmul %41, %43, %cst_39 {dimension_numbers = #tpu.dot_dimension_numbers<[1], [0], [0], [1], [0, 0, 1, 1], [], []>} : vector<24x128xbf16>, vector<128x128xbf16>, vector<24x128xf32> -> vector<24x128xf32>
    %45 = arith.addf %40, %44 : vector<24x128xf32>
    %c81 = arith.constant 81 : index
    %c0_40 = arith.constant 0 : index
    %46 = vector.load %arg5[%c81, %c0_40] : memref<112x128xbf16, #tpu.memory_space<vmem>>, vector<24x128xbf16>
    %c8 = arith.constant 8 : index
    %c0_41 = arith.constant 0 : index
    %c0_42 = arith.constant 0 : index
    %47 = vector.load %arg3[%c8, %c0_41, %c0_42] : memref<9x128x128xbf16, #tpu.memory_space<vmem>>, vector<1x128x128xbf16>
    %48 = vector.shape_cast %47 : vector<1x128x128xbf16> to vector<128x128xbf16>
    %cst_43 = arith.constant dense<0.000000e+00> : vector<24x128xf32>
    %49 = tpu.matmul %46, %48, %cst_43 {dimension_numbers = #tpu.dot_dimension_numbers<[1], [0], [0], [1], [0, 0, 1, 1], [], []>} : vector<24x128xbf16>, vector<128x128xbf16>, vector<24x128xf32> -> vector<24x128xf32>
    %50 = arith.addf %45, %49 : vector<24x128xf32>
    %cst_44 = arith.constant 0.000000e+00 : f32
    %51 = vector.broadcast %cst_44 : f32 to vector<24x128xf32>
    %52 = arith.maximumf %50, %51 : vector<24x128xf32>
    %c0_45 = arith.constant 0 : index
    %c0_46 = arith.constant 0 : index
    %53 = vector.load %arg4[%c0_45, %c0_46] : memref<24x128xf32, #tpu.memory_space<vmem>>, vector<24x128xf32>
    tpu.vector_store %arg4[%c0_45, %c0_46], %52 {strides = array<i32>} : memref<24x128xf32, #tpu.memory_space<vmem>>, vector<24x128xf32>,
    return
  }
  func.func @transform_0(%arg0: i32) -> (i32, i32) {
    %c0_i32 = arith.constant 0 : i32
    %c0_i32_0 = arith.constant 0 : i32
    return %arg0, %c0_i32 : i32, i32
  }
  func.func @transform_1(%arg0: i32) -> (i32, i32) {
    %c0_i32 = arith.constant 0 : i32
    %c0_i32_0 = arith.constant 0 : i32
    %c0_i32_1 = arith.constant 0 : i32
    return %c0_i32, %c0_i32_0 : i32, i32
  }
  func.func @transform_2(%arg0: i32) -> (i32, i32, i32) {
    %c0_i32 = arith.constant 0 : i32
    %c0_i32_0 = arith.constant 0 : i32
    %c0_i32_1 = arith.constant 0 : i32
    %c0_i32_2 = arith.constant 0 : i32
    return %c0_i32, %c0_i32_0, %c0_i32_1 : i32, i32, i32
  }
  func.func @transform_3(%arg0: i32) -> (i32, i32) {
    %c0_i32 = arith.constant 0 : i32
    %c0_i32_0 = arith.constant 0 : i32
    return %arg0, %c0_i32 : i32, i32
  }
}

</mosaic_0001>

<llo_original>
// kernel: forward.1
$region0: #{forward.1}
  #allocation0 [shape = 'u32[]', space=smem, size = 0x4, offset = 0x4, fixed_abs, tag = 'smem constant byte address 0x4 - core index']
  #allocation1 [shape = 'u32[144,128]{1,0:T(1,128)}', space=vmem, size = 0x12000, scoped, tag = 'internal scratch']
  #allocation2 [shape = 'bf16[112,128]{1,0:T(16,128)(2,1)}', space=vmem, size = 0x7000, scoped, tag = 'scratch operand']
  %s0 = inlined_call_operand.vmem [shape: bf16[112,128], index: 0, kind: input, shape index: {}]
  %s1 = inlined_call_operand.vmem [shape: bf16[128,128], index: 1, kind: input, shape index: {}]
  %s2 = inlined_call_operand.vmem [shape: bf16[9,128,128], index: 2, kind: input, shape index: {}]
  %s3 = inlined_call_operand.vmem [shape: f32[24,128], index: 3, kind: output, shape index: {}]
  %s4 = sld [smem:[#allocation0]]
  $region22: #{forward.1} parent=0
    _
  %s6 = ssub.s32 1, %s4
  %s7 = scalar_select 0, %s6, %s4
  // Predicated region
  $region2: #{forward.1} parent=0 // pred_check
    _
  $region3: #{forward.1} parent=0 // pred_check_branch
    %9 = sbr.rel (0) target = $region5
  $region4: #{forward.1} parent=0 // pred_region
    _
  $region5: #{forward.1} parent=0 // pred_fallthru
    _
  // Predicated region
  $region6: #{forward.1} parent=0 // pred_check
    _
  $region7: #{forward.1} parent=0 // pred_check_branch
    %11 = sbr.rel (0) target = $region9
  $region8: #{forward.1} parent=0 // pred_region
    _
  $region9: #{forward.1} parent=0 // pred_fallthru
    _
  // Predicated region
  $region10: #{forward.1} parent=0 // pred_check
    _
  $region11: #{forward.1} parent=0 // pred_check_branch
    %13 = sbr.rel (0) target = $region13
  $region12: #{forward.1} parent=0 // pred_region
    _
  $region13: #{forward.1} parent=0 // pred_fallthru
    _
  %v15 = vld [vmem:[%s0] sm:$0xf]
  %v16 = vld [vmem:[%s0 + $0x4] sm:$0xf]
  %v17 = vld [vmem:[%s0 + $0x8] sm:$0xf]
  %v18 = vld [vmem:[%s0 + $0xc] sm:$0xf]
  %v19 = vld [vmem:[%s0 + $0x10] sm:$0xf]
  %v20 = vld [vmem:[%s0 + $0x14] sm:$0xf]
  %v21 = vld [vmem:[%s0 + $0x18] sm:$0xf]
  %v22 = vld [vmem:[%s0 + $0x1c] sm:$0xf]
  %v23 = vld [vmem:[%s0 + $0x20] sm:$0xf]
  %v24 = vld [vmem:[%s0 + $0x24] sm:$0xf]
  %v25 = vld [vmem:[%s0 + $0x28] sm:$0xf]
  %v26 = vld [vmem:[%s0 + $0x2c] sm:$0xf]
  %v27 = vld [vmem:[%s0 + $0x30] sm:$0xf]
  %v28 = vld [vmem:[%s0 + $0x34] sm:$0xf]
  %v29 = vld [vmem:[%s1] sm:$0xf]
  %v30 = vld [vmem:[%s1 + $0x4] sm:$0xf]
  %v31 = vld [vmem:[%s1 + $0x8] sm:$0xf]
  %v32 = vld [vmem:[%s1 + $0xc] sm:$0xf]
  %v33 = vld [vmem:[%s1 + $0x10] sm:$0xf]
  %v34 = vld [vmem:[%s1 + $0x14] sm:$0xf]
  %v35 = vld [vmem:[%s1 + $0x18] sm:$0xf]
  %v36 = vld [vmem:[%s1 + $0x1c] sm:$0xf]
  %v37 = vld [vmem:[%s1 + $0x20] sm:$0xf]
  %v38 = vld [vmem:[%s1 + $0x24] sm:$0xf]
  %v39 = vld [vmem:[%s1 + $0x28] sm:$0xf]
  %v40 = vld [vmem:[%s1 + $0x2c] sm:$0xf]
  %v41 = vld [vmem:[%s1 + $0x30] sm:$0xf]
  %v42 = vld [vmem:[%s1 + $0x34] sm:$0xf]
  %v43 = vld [vmem:[%s1 + $0x38] sm:$0xf]
  %v44 = vld [vmem:[%s1 + $0x3c] sm:$0xf]
  %v59 = vunpack.c.l.b16 %v15
  %v60 = vunpack.c.l.b16 %v16
  %v61 = vunpack.c.l.b16 %v17
  %v62 = vunpack.c.l.b16 %v18
  %v63 = vunpack.c.l.b16 %v19
  %v64 = vunpack.c.l.b16 %v20
  %v65 = vunpack.c.l.b16 %v21
  %v66 = vunpack.c.l.b16 %v22
  %v67 = vunpack.c.l.b16 %v23
  %v68 = vunpack.c.l.b16 %v24
  %v69 = vunpack.c.l.b16 %v25
  %v70 = vunpack.c.l.b16 %v26
  %v71 = vunpack.c.l.b16 %v27
  %v72 = vunpack.c.l.b16 %v28
  %v73 = vpack.c.b16 %v60, %v59
  %v74 = vpack.c.b16 %v62, %v61
  %v75 = vpack.c.b16 %v64, %v63
  %v76 = vpack.c.b16 %v66, %v65
  %v77 = vpack.c.b16 %v68, %v67
  %v78 = vpack.c.b16 %v70, %v69
  %v79 = vpack.c.b16 %v72, %v71
  %v103 = vunpack.c.l.b16 %v29
  %v104 = vunpack.c.l.b16 %v30
  %v105 = vunpack.c.l.b16 %v31
  %v106 = vunpack.c.l.b16 %v32
  %v107 = vunpack.c.l.b16 %v33
  %v108 = vunpack.c.l.b16 %v34
  %v109 = vunpack.c.l.b16 %v35
  %v110 = vunpack.c.l.b16 %v36
  %v111 = vunpack.c.l.b16 %v37
  %v112 = vunpack.c.l.b16 %v38
  %v113 = vunpack.c.l.b16 %v39
  %v114 = vunpack.c.l.b16 %v40
  %v115 = vunpack.c.l.b16 %v41
  %v116 = vunpack.c.l.b16 %v42
  %v117 = vunpack.c.l.b16 %v43
  %v118 = vunpack.c.l.b16 %v44
  %v119 = vpack.c.b16 %v104, %v103
  %v120 = vpack.c.b16 %v106, %v105
  %v121 = vpack.c.b16 %v108, %v107
  %v122 = vpack.c.b16 %v110, %v109
  %v123 = vpack.c.b16 %v112, %v111
  %v124 = vpack.c.b16 %v114, %v113
  %v125 = vpack.c.b16 %v116, %v115
  %v126 = vpack.c.b16 %v118, %v117
  %135 = vmatprep.subr.bf16.mxu0 0
  %136 = vmatpush1.bf16.msra.mxu0 %v119
  %137 = vmatprep.subr.bf16.mxu0 0
  %138 = vmatpush1.bf16.msra.mxu0 %v120
  %139 = vmatprep.subr.bf16.mxu0 0
  %140 = vmatpush1.bf16.msra.mxu0 %v121
  %141 = vmatprep.subr.bf16.mxu0 0
  %142 = vmatpush1.bf16.msra.mxu0 %v122
  %143 = vmatprep.subr.bf16.mxu0 0
  %144 = vmatpush1.bf16.msra.mxu0 %v123
  %145 = vmatprep.subr.bf16.mxu0 0
  %146 = vmatpush1.bf16.msra.mxu0 %v124
  %147 = vmatprep.subr.bf16.mxu0 0
  %148 = vmatpush1.bf16.msra.mxu0 %v125
  %149 = vmatprep.subr.bf16.mxu0 0
  %150 = vmatpush1.bf16.msra.mxu0 %v126
  %151 = vmatprep.subr.bf16.mxu0 0
  %152 = vmatpush1.bf16.msra.mxu0 0
  %153 = vmatprep.subr.bf16.mxu0 0
  %154 = vmatpush1.bf16.msra.mxu0 0
  %155 = vmatprep.subr.bf16.mxu0 0
  %156 = vmatpush1.bf16.msra.mxu0 0
  %157 = vmatprep.subr.bf16.mxu0 0
  %158 = vmatpush1.bf16.msra.mxu0 0
  %159 = vmatprep.subr.bf16.mxu0 0
  %160 = vmatpush1.bf16.msra.mxu0 0
  %161 = vmatprep.subr.bf16.mxu0 0
  %162 = vmatpush1.bf16.msra.mxu0 0
  %163 = vmatprep.subr.bf16.mxu0 0
  %164 = vmatpush1.bf16.msra.mxu0 0
  %165 = vmatprep.subr.bf16.mxu0 0
  %166 = vmatpush1.bf16.msra.mxu0 0
  %167 = vmatprep.mubr.bf16.mxu0 0
  %168 = vmatmul.mubr.bf16.gmra.mrb[0].mxu0 %v73
  %v169 = vpop.f32.mrb[0].mxu0
  %v170 = vadd.f32 0.0, %v169
  %v171 = vpop.f32.mrb[0].mxu0
  %v172 = vpop.f32.mrb[0].mxu0
  %v173 = vadd.f32 0.0, %v172
  %v174 = vpop.f32.mrb[0].mxu0
  %175 = vmatprep.mubr.bf16.mxu0 0
  %176 = vmatmul.mubr.bf16.gmra.mrb[0].mxu0 %v74
  %v177 = vpop.f32.mrb[0].mxu0
  %v178 = vadd.f32 0.0, %v177
  %v179 = vpop.f32.mrb[0].mxu0
  %v180 = vpop.f32.mrb[0].mxu0
  %v181 = vadd.f32 0.0, %v180
  %v182 = vpop.f32.mrb[0].mxu0
  %183 = vmatprep.mubr.bf16.mxu0 0
  %184 = vmatmul.mubr.bf16.gmra.mrb[0].mxu0 %v75
  %v185 = vpop.f32.mrb[0].mxu0
  %v186 = vadd.f32 0.0, %v185
  %v187 = vpop.f32.mrb[0].mxu0
  %v188 = vpop.f32.mrb[0].mxu0
  %v189 = vadd.f32 0.0, %v188
  %v190 = vpop.f32.mrb[0].mxu0
  %191 = vmatprep.mubr.bf16.mxu0 0
  %192 = vmatmul.mubr.bf16.gmra.mrb[0].mxu0 %v76
  %v193 = vpop.f32.mrb[0].mxu0
  %v194 = vadd.f32 0.0, %v193
  %v195 = vpop.f32.mrb[0].mxu0
  %v196 = vpop.f32.mrb[0].mxu0
  %v197 = vadd.f32 0.0, %v196
  %v198 = vpop.f32.mrb[0].mxu0
  %199 = vmatprep.mubr.bf16.mxu0 0
  %200 = vmatmul.mubr.bf16.gmra.mrb[0].mxu0 %v77
  %v201 = vpop.f32.mrb[0].mxu0
  %v202 = vadd.f32 0.0, %v201
  %v203 = vpop.f32.mrb[0].mxu0
  %v204 = vpop.f32.mrb[0].mxu0
  %v205 = vadd.f32 0.0, %v204
  %v206 = vpop.f32.mrb[0].mxu0
  %207 = vmatprep.mubr.bf16.mxu0 0
  %208 = vmatmul.mubr.bf16.gmra.mrb[0].mxu0 %v78
  %v209 = vpop.f32.mrb[0].mxu0
  %v210 = vadd.f32 0.0, %v209
  %v211 = vpop.f32.mrb[0].mxu0
  %v212 = vpop.f32.mrb[0].mxu0
  %v213 = vadd.f32 0.0, %v212
  %v214 = vpop.f32.mrb[0].mxu0
  %215 = vmatprep.mubr.bf16.mxu0 0
  %216 = vmatmul.mubr.bf16.gmra.mrb[0].mxu0 %v79
  %v217 = vpop.f32.mrb[0].mxu0
  %v218 = vadd.f32 0.0, %v217
  %v219 = vpop.f32.mrb[0].mxu0
  %v220 = vpop.f32.mrb[0].mxu0
  %v221 = vadd.f32 0.0, %v220
  %v222 = vpop.f32.mrb[0].mxu0
  %223 = vdwg.mxu0
  %v224 = vmax.f32 %v170, 0.0
  %v225 = vmax.f32 %v173, 0.0
  %v226 = vmax.f32 %v178, 0.0
  %v227 = vmax.f32 %v181, 0.0
  %v228 = vmax.f32 %v186, 0.0
  %v229 = vmax.f32 %v189, 0.0
  %v230 = vmax.f32 %v194, 0.0
  %v231 = vmax.f32 %v197, 0.0
  %v232 = vmax.f32 %v202, 0.0
  %v233 = vmax.f32 %v205, 0.0
  %v234 = vmax.f32 %v210, 0.0
  %v235 = vmax.f32 %v213, 0.0
  %v236 = vmax.f32 %v218, 0.0
  %v237 = vmax.f32 %v221, 0.0
  %v238 = vpack.c.bf16 %v225, %v224
  %v239 = vpack.c.bf16 %v227, %v226
  %v240 = vpack.c.bf16 %v229, %v228
  %v241 = vpack.c.bf16 %v231, %v230
  %v242 = vpack.c.bf16 %v233, %v232
  %v243 = vpack.c.bf16 %v235, %v234
  %v244 = vpack.c.bf16 %v237, %v236
  %245 = vst [vmem:[#allocation2] sm:$0xff] %v238
  %246 = vst [vmem:[#allocation2 + $0x8] sm:$0xff] %v239
  %247 = vst [vmem:[#allocation2 + $0x10] sm:$0xff] %v240
  %248 = vst [vmem:[#allocation2 + $0x18] sm:$0xff] %v241
  %249 = vst [vmem:[#allocation2 + $0x20] sm:$0xff] %v242
  %250 = vst [vmem:[#allocation2 + $0x28] sm:$0xff] %v243
  %251 = vst [vmem:[#allocation2 + $0x30] sm:$0xff] %v244
  %v252 = vld [vmem:[#allocation2 + $0x20] sm:$0xe0]
  %v253 = vld [vmem:[#allocation2 + $0x28] sm:$0xff]
  %v254 = vld [vmem:[#allocation2 + $0x30] sm:$0x3]
  %v255 = vld [vmem:[%s2] sm:$0xf]
  %v256 = vld [vmem:[%s2 + $0x4] sm:$0xf]
  %v257 = vld [vmem:[%s2 + $0x8] sm:$0xf]
  %v258 = vld [vmem:[%s2 + $0xc] sm:$0xf]
  %v259 = vld [vmem:[%s2 + $0x10] sm:$0xf]
  %v260 = vld [vmem:[%s2 + $0x14] sm:$0xf]
  %v261 = vld [vmem:[%s2 + $0x18] sm:$0xf]
  %v262 = vld [vmem:[%s2 + $0x1c] sm:$0xf]
  %v263 = vld [vmem:[%s2 + $0x20] sm:$0xf]
  %v264 = vld [vmem:[%s2 + $0x24] sm:$0xf]
  %v265 = vld [vmem:[%s2 + $0x28] sm:$0xf]
  %v266 = vld [vmem:[%s2 + $0x2c] sm:$0xf]
  %v267 = vld [vmem:[%s2 + $0x30] sm:$0xf]
  %v268 = vld [vmem:[%s2 + $0x34] sm:$0xf]
  %v269 = vld [vmem:[%s2 + $0x38] sm:$0xf]
  %v270 = vld [vmem:[%s2 + $0x3c] sm:$0xf]
  %v271 = vld [vmem:[#allocation2 + $0x18] sm:$0xfe]
  %v272 = vld [vmem:[#allocation2 + $0x20] sm:$0x3f]
  %s273 = scalar_lea.vmem %s2, 64
  %v274 = vld [vmem:[%s273] sm:$0xf]
  %v275 = vld [vmem:[%s273 + $0x4] sm:$0xf]
  %v276 = vld [vmem:[%s273 + $0x8] sm:$0xf]
  %v277 = vld [vmem:[%s273 + $0xc] sm:$0xf]
  %v278 = vld [vmem:[%s273 + $0x10] sm:$0xf]
  %v279 = vld [vmem:[%s273 + $0x14] sm:$0xf]
  %v280 = vld [vmem:[%s273 + $0x18] sm:$0xf]
  %v281 = vld [vmem:[%s273 + $0x1c] sm:$0xf]
  %v282 = vld [vmem:[%s273 + $0x20] sm:$0xf]
  %v283 = vld [vmem:[%s273 + $0x24] sm:$0xf]
  %v284 = vld [vmem:[%s273 + $0x28] sm:$0xf]
  %v285 = vld [vmem:[%s273 + $0x2c] sm:$0xf]
  %v286 = vld [vmem:[%s273 + $0x30] sm:$0xf]
  %v287 = vld [vmem:[%s273 + $0x34] sm:$0xf]
  %v288 = vld [vmem:[%s273 + $0x38] sm:$0xf]
  %v289 = vld [vmem:[%s273 + $0x3c] sm:$0xf]
  %vm290 = vsmask.f32 6400
  %v292 = vshrl.u32 %v271, 16
  %v294 = vrot.slane %v292, 1
  %v295 = vshll.u32 %v271, 16
  %v297 = vrot.slane %v295, 2
  %v298 = vor.u32 %v294, %v297
  %v300 = vshrl.u32 %v272, 16
  %v302 = vrot.slane %v300, 1
  %v303 = vshll.u32 %v272, 16
  %v305 = vrot.slane %v303, 2
  %v306 = vor.u32 %v302, %v305
  %v307 = vsel %vm290, %v298, %v306
  %v326 = vunpack.c.l.b16 %v274
  %v327 = vunpack.c.l.b16 %v275
  %v328 = vunpack.c.l.b16 %v276
  %v329 = vunpack.c.l.b16 %v277
  %v330 = vunpack.c.l.b16 %v278
  %v331 = vunpack.c.l.b16 %v279
  %v332 = vunpack.c.l.b16 %v280
  %v333 = vunpack.c.l.b16 %v281
  %v334 = vunpack.c.l.b16 %v282
  %v335 = vunpack.c.l.b16 %v283
  %v336 = vunpack.c.l.b16 %v284
  %v337 = vunpack.c.l.b16 %v285
  %v338 = vunpack.c.l.b16 %v286
  %v339 = vunpack.c.l.b16 %v287
  %v340 = vunpack.c.l.b16 %v288
  %v341 = vunpack.c.l.b16 %v289
  %v342 = vpack.c.b16 %v327, %v326
  %v343 = vpack.c.b16 %v329, %v328
  %v344 = vpack.c.b16 %v331, %v330
  %v345 = vpack.c.b16 %v333, %v332
  %v346 = vpack.c.b16 %v335, %v334
  %v347 = vpack.c.b16 %v337, %v336
  %v348 = vpack.c.b16 %v339, %v338
  %v349 = vpack.c.b16 %v341, %v340
  %358 = vmatprep.subr.bf16.mxu0 0
  %359 = vmatpush1.bf16.msra.mxu0 %v342
  %360 = vmatprep.subr.bf16.mxu0 0
  %361 = vmatpush1.bf16.msra.mxu0 %v343
  %362 = vmatprep.subr.bf16.mxu0 0
  %363 = vmatpush1.bf16.msra.mxu0 %v344
  %364 = vmatprep.subr.bf16.mxu0 0
  %365 = vmatpush1.bf16.msra.mxu0 %v345
  %366 = vmatprep.subr.bf16.mxu0 0
  %367 = vmatpush1.bf16.msra.mxu0 %v346
  %368 = vmatprep.subr.bf16.mxu0 0
  %369 = vmatpush1.bf16.msra.mxu0 %v347
  %370 = vmatprep.subr.bf16.mxu0 0
  %371 = vmatpush1.bf16.msra.mxu0 %v348
  %372 = vmatprep.subr.bf16.mxu0 0
  %373 = vmatpush1.bf16.msra.mxu0 %v349
  %374 = vmatprep.subr.bf16.mxu0 0
  %375 = vmatpush1.bf16.msra.mxu0 0
  %376 = vmatprep.subr.bf16.mxu0 0
  %377 = vmatpush1.bf16.msra.mxu0 0
  %378 = vmatprep.subr.bf16.mxu0 0
  %379 = vmatpush1.bf16.msra.mxu0 0
  %380 = vmatprep.subr.bf16.mxu0 0
  %381 = vmatpush1.bf16.msra.mxu0 0
  %382 = vmatprep.subr.bf16.mxu0 0
  %383 = vmatpush1.bf16.msra.mxu0 0
  %384 = vmatprep.subr.bf16.mxu0 0
  %385 = vmatpush1.bf16.msra.mxu0 0
  %386 = vmatprep.subr.bf16.mxu0 0
  %387 = vmatpush1.bf16.msra.mxu0 0
  %388 = vmatprep.subr.bf16.mxu0 0
  %389 = vmatpush1.bf16.msra.mxu0 0
  %390 = vmatprep.mubr.bf16.mxu0 0
  %391 = vmatmul.mubr.bf16.gmra.mrb[0].mxu0 %v307
  %v392 = vpop.f32.mrb[0].mxu0
  %v393 = vadd.f32 0.0, %v392
  %v394 = vpop.f32.mrb[0].mxu0
  %v395 = vpop.f32.mrb[0].mxu0
  %v396 = vadd.f32 0.0, %v395
  %v397 = vpop.f32.mrb[0].mxu0
  %398 = vmatprep.mubr.bf16.mxu0 0
  %399 = vmatmul.mubr.bf16.gmra.mrb[0].mxu0 %v306
  %v400 = vpop.f32.mrb[0].mxu0
  %v401 = vadd.f32 0.0, %v400
  %v402 = vpop.f32.mrb[0].mxu0
  %v403 = vpop.f32.mrb[0].mxu0
  %v404 = vpop.f32.mrb[0].mxu0
  %405 = vdwg.mxu0
  %vm406 = vsmask.f32 2304
  %v408 = vshrl.u32 %v252, 16
  %v410 = vrot.slane %v408, 5
  %v411 = vshll.u32 %v252, 16
  %v413 = vrot.slane %v411, 6
  %v414 = vor.u32 %v410, %v413
  %v416 = vshrl.u32 %v253, 16
  %v418 = vrot.slane %v416, 5
  %v419 = vshll.u32 %v253, 16
  %v421 = vrot.slane %v419, 6
  %v422 = vor.u32 %v418, %v421
  %v423 = vsel %vm406, %v414, %v422
  %v425 = vshrl.u32 %v254, 16
  %v427 = vrot.slane %v425, 5
  %v428 = vshll.u32 %v254, 16
  %v430 = vrot.slane %v428, 6
  %v431 = vor.u32 %v427, %v430
  %v432 = vsel %vm406, %v422, %v431
  %v451 = vunpack.c.l.b16 %v255
  %v452 = vunpack.c.l.b16 %v256
  %v453 = vunpack.c.l.b16 %v257
  %v454 = vunpack.c.l.b16 %v258
  %v455 = vunpack.c.l.b16 %v259
  %v456 = vunpack.c.l.b16 %v260
  %v457 = vunpack.c.l.b16 %v261
  %v458 = vunpack.c.l.b16 %v262
  %v459 = vunpack.c.l.b16 %v263
  %v460 = vunpack.c.l.b16 %v264
  %v461 = vunpack.c.l.b16 %v265
  %v462 = vunpack.c.l.b16 %v266
  %v463 = vunpack.c.l.b16 %v267
  %v464 = vunpack.c.l.b16 %v268
  %v465 = vunpack.c.l.b16 %v269
  %v466 = vunpack.c.l.b16 %v270
  %v467 = vpack.c.b16 %v452, %v451
  %v468 = vpack.c.b16 %v454, %v453
  %v469 = vpack.c.b16 %v456, %v455
  %v470 = vpack.c.b16 %v458, %v457
  %v471 = vpack.c.b16 %v460, %v459
  %v472 = vpack.c.b16 %v462, %v461
  %v473 = vpack.c.b16 %v464, %v463
  %v474 = vpack.c.b16 %v466, %v465
  %483 = vmatprep.subr.bf16.mxu0 0
  %484 = vmatpush1.bf16.msra.mxu0 %v467
  %485 = vmatprep.subr.bf16.mxu0 0
  %486 = vmatpush1.bf16.msra.mxu0 %v468
  %487 = vmatprep.subr.bf16.mxu0 0
  %488 = vmatpush1.bf16.msra.mxu0 %v469
  %489 = vmatprep.subr.bf16.mxu0 0
  %490 = vmatpush1.bf16.msra.mxu0 %v470
  %491 = vmatprep.subr.bf16.mxu0 0
  %492 = vmatpush1.bf16.msra.mxu0 %v471
  %493 = vmatprep.subr.bf16.mxu0 0
  %494 = vmatpush1.bf16.msra.mxu0 %v472
  %495 = vmatprep.subr.bf16.mxu0 0
  %496 = vmatpush1.bf16.msra.mxu0 %v473
  %497 = vmatprep.subr.bf16.mxu0 0
  %498 = vmatpush1.bf16.msra.mxu0 %v474
  %499 = vmatprep.subr.bf16.mxu0 0
  %500 = vmatpush1.bf16.msra.mxu0 0
  %501 = vmatprep.subr.bf16.mxu0 0
  %502 = vmatpush1.bf16.msra.mxu0 0
  %503 = vmatprep.subr.bf16.mxu0 0
  %504 = vmatpush1.bf16.msra.mxu0 0
  %505 = vmatprep.subr.bf16.mxu0 0
  %506 = vmatpush1.bf16.msra.mxu0 0
  %507 = vmatprep.subr.bf16.mxu0 0
  %508 = vmatpush1.bf16.msra.mxu0 0
  %509 = vmatprep.subr.bf16.mxu0 0
  %510 = vmatpush1.bf16.msra.mxu0 0
  %511 = vmatprep.subr.bf16.mxu0 0
  %512 = vmatpush1.bf16.msra.mxu0 0
  %513 = vmatprep.subr.bf16.mxu0 0
  %514 = vmatpush1.bf16.msra.mxu0 0
  %515 = vmatprep.mubr.bf16.mxu0 0
  %516 = vmatmul.mubr.bf16.gmra.mrb[0].mxu0 %v423
  %v517 = vpop.f32.mrb[0].mxu0
  %v518 = vadd.f32 %v393, %v517
  %v519 = vpop.f32.mrb[0].mxu0
  %v520 = vpop.f32.mrb[0].mxu0
  %v521 = vadd.f32 %v396, %v520
  %v522 = vpop.f32.mrb[0].mxu0
  %523 = vmatprep.mubr.bf16.mxu0 0
  %524 = vmatmul.mubr.bf16.gmra.mrb[0].mxu0 %v432
  %v525 = vpop.f32.mrb[0].mxu0
  %v526 = vadd.f32 %v401, %v525
  %v527 = vpop.f32.mrb[0].mxu0
  %v528 = vpop.f32.mrb[0].mxu0
  %v529 = vpop.f32.mrb[0].mxu0
  %530 = vdwg.mxu0
  %v531 = vld [vmem:[#allocation2 + $0x20] sm:$0xc0]
  %s532 = scalar_lea.vmem %s2, 128
  %v533 = vld [vmem:[%s532] sm:$0xf]
  %v534 = vld [vmem:[%s532 + $0x4] sm:$0xf]
  %v535 = vld [vmem:[%s532 + $0x8] sm:$0xf]
  %v536 = vld [vmem:[%s532 + $0xc] sm:$0xf]
  %v537 = vld [vmem:[%s532 + $0x10] sm:$0xf]
  %v538 = vld [vmem:[%s532 + $0x14] sm:$0xf]
  %v539 = vld [vmem:[%s532 + $0x18] sm:$0xf]
  %v540 = vld [vmem:[%s532 + $0x1c] sm:$0xf]
  %v541 = vld [vmem:[%s532 + $0x20] sm:$0xf]
  %v542 = vld [vmem:[%s532 + $0x24] sm:$0xf]
  %v543 = vld [vmem:[%s532 + $0x28] sm:$0xf]
  %v544 = vld [vmem:[%s532 + $0x2c] sm:$0xf]
  %v545 = vld [vmem:[%s532 + $0x30] sm:$0xf]
  %v546 = vld [vmem:[%s532 + $0x34] sm:$0xf]
  %v547 = vld [vmem:[%s532 + $0x38] sm:$0xf]
  %v548 = vld [vmem:[%s532 + $0x3c] sm:$0xf]
  %vm552 = vcmask 1041408
  %v553 = vrot.slane %v531, 6
  %v554 = vrot.slane %v253, 6
  %v555 = vsel %vm552, %v553, %v554
  %v556 = vrot.slane %v254, 6
  %v557 = vsel %vm552, %v554, %v556
  %v576 = vunpack.c.l.b16 %v533
  %v577 = vunpack.c.l.b16 %v534
  %v578 = vunpack.c.l.b16 %v535
  %v579 = vunpack.c.l.b16 %v536
  %v580 = vunpack.c.l.b16 %v537
  %v581 = vunpack.c.l.b16 %v538
  %v582 = vunpack.c.l.b16 %v539
  %v583 = vunpack.c.l.b16 %v540
  %v584 = vunpack.c.l.b16 %v541
  %v585 = vunpack.c.l.b16 %v542
  %v586 = vunpack.c.l.b16 %v543
  %v587 = vunpack.c.l.b16 %v544
  %v588 = vunpack.c.l.b16 %v545
  %v589 = vunpack.c.l.b16 %v546
  %v590 = vunpack.c.l.b16 %v547
  %v591 = vunpack.c.l.b16 %v548
  %v592 = vpack.c.b16 %v577, %v576
  %v593 = vpack.c.b16 %v579, %v578
  %v594 = vpack.c.b16 %v581, %v580
  %v595 = vpack.c.b16 %v583, %v582
  %v596 = vpack.c.b16 %v585, %v584
  %v597 = vpack.c.b16 %v587, %v586
  %v598 = vpack.c.b16 %v589, %v588
  %v599 = vpack.c.b16 %v591, %v590
  %608 = vmatprep.subr.bf16.mxu0 0
  %609 = vmatpush1.bf16.msra.mxu0 %v592
  %610 = vmatprep.subr.bf16.mxu0 0
  %611 = vmatpush1.bf16.msra.mxu0 %v593
  %612 = vmatprep.subr.bf16.mxu0 0
  %613 = vmatpush1.bf16.msra.mxu0 %v594
  %614 = vmatprep.subr.bf16.mxu0 0
  %615 = vmatpush1.bf16.msra.mxu0 %v595
  %616 = vmatprep.subr.bf16.mxu0 0
  %617 = vmatpush1.bf16.msra.mxu0 %v596
  %618 = vmatprep.subr.bf16.mxu0 0
  %619 = vmatpush1.bf16.msra.mxu0 %v597
  %620 = vmatprep.subr.bf16.mxu0 0
  %621 = vmatpush1.bf16.msra.mxu0 %v598
  %622 = vmatprep.subr.bf16.mxu0 0
  %623 = vmatpush1.bf16.msra.mxu0 %v599
  %624 = vmatprep.subr.bf16.mxu0 0
  %625 = vmatpush1.bf16.msra.mxu0 0
  %626 = vmatprep.subr.bf16.mxu0 0
  %627 = vmatpush1.bf16.msra.mxu0 0
  %628 = vmatprep.subr.bf16.mxu0 0
  %629 = vmatpush1.bf16.msra.mxu0 0
  %630 = vmatprep.subr.bf16.mxu0 0
  %631 = vmatpush1.bf16.msra.mxu0 0
  %632 = vmatprep.subr.bf16.mxu0 0
  %633 = vmatpush1.bf16.msra.mxu0 0
  %634 = vmatprep.subr.bf16.mxu0 0
  %635 = vmatpush1.bf16.msra.mxu0 0
  %636 = vmatprep.subr.bf16.mxu0 0
  %637 = vmatpush1.bf16.msra.mxu0 0
  %638 = vmatprep.subr.bf16.mxu0 0
  %639 = vmatpush1.bf16.msra.mxu0 0
  %640 = vmatprep.mubr.bf16.mxu0 0
  %641 = vmatmul.mubr.bf16.gmra.mrb[0].mxu0 %v555
  %v642 = vpop.f32.mrb[0].mxu0
  %v643 = vadd.f32 0.0, %v642
  %v644 = vpop.f32.mrb[0].mxu0
  %v645 = vpop.f32.mrb[0].mxu0
  %v646 = vadd.f32 0.0, %v645
  %v647 = vpop.f32.mrb[0].mxu0
  %648 = vmatprep.mubr.bf16.mxu0 0
  %649 = vmatmul.mubr.bf16.gmra.mrb[0].mxu0 %v557
  %v650 = vpop.f32.mrb[0].mxu0
  %v651 = vadd.f32 0.0, %v650
  %v652 = vpop.f32.mrb[0].mxu0
  %v653 = vpop.f32.mrb[0].mxu0
  %v654 = vpop.f32.mrb[0].mxu0
  %655 = vdwg.mxu0
  %v656 = vadd.f32 %v518, %v643
  %v657 = vadd.f32 %v521, %v646
  %v658 = vadd.f32 %v526, %v651
  %v659 = vld [vmem:[#allocation2 + $0x8] sm:$0x80]
  %v660 = vld [vmem:[#allocation2 + $0x10] sm:$0xff]
  %v661 = vld [vmem:[#allocation2 + $0x18] sm:$0x7]
  %s662 = scalar_lea.vmem %s2, 192
  %v663 = vld [vmem:[%s662] sm:$0xf]
  %v664 = vld [vmem:[%s662 + $0x4] sm:$0xf]
  %v665 = vld [vmem:[%s662 + $0x8] sm:$0xf]
  %v666 = vld [vmem:[%s662 + $0xc] sm:$0xf]
  %v667 = vld [vmem:[%s662 + $0x10] sm:$0xf]
  %v668 = vld [vmem:[%s662 + $0x14] sm:$0xf]
  %v669 = vld [vmem:[%s662 + $0x18] sm:$0xf]
  %v670 = vld [vmem:[%s662 + $0x1c] sm:$0xf]
  %v671 = vld [vmem:[%s662 + $0x20] sm:$0xf]
  %v672 = vld [vmem:[%s662 + $0x24] sm:$0xf]
  %v673 = vld [vmem:[%s662 + $0x28] sm:$0xf]
  %v674 = vld [vmem:[%s662 + $0x2c] sm:$0xf]
  %v675 = vld [vmem:[%s662 + $0x30] sm:$0xf]
  %v676 = vld [vmem:[%s662 + $0x34] sm:$0xf]
  %v677 = vld [vmem:[%s662 + $0x38] sm:$0xf]
  %v678 = vld [vmem:[%s662 + $0x3c] sm:$0xf]
  %vm682 = vcmask 1040384
  %v683 = vrot.slane %v659, 7
  %v684 = vrot.slane %v660, 7
  %v685 = vsel %vm682, %v683, %v684
  %v686 = vrot.slane %v661, 7
  %v687 = vsel %vm682, %v684, %v686
  %v706 = vunpack.c.l.b16 %v663
  %v707 = vunpack.c.l.b16 %v664
  %v708 = vunpack.c.l.b16 %v665
  %v709 = vunpack.c.l.b16 %v666
  %v710 = vunpack.c.l.b16 %v667
  %v711 = vunpack.c.l.b16 %v668
  %v712 = vunpack.c.l.b16 %v669
  %v713 = vunpack.c.l.b16 %v670
  %v714 = vunpack.c.l.b16 %v671
  %v715 = vunpack.c.l.b16 %v672
  %v716 = vunpack.c.l.b16 %v673
  %v717 = vunpack.c.l.b16 %v674
  %v718 = vunpack.c.l.b16 %v675
  %v719 = vunpack.c.l.b16 %v676
  %v720 = vunpack.c.l.b16 %v677
  %v721 = vunpack.c.l.b16 %v678
  %v722 = vpack.c.b16 %v707, %v706
  %v723 = vpack.c.b16 %v709, %v708
  %v724 = vpack.c.b16 %v711, %v710
  %v725 = vpack.c.b16 %v713, %v712
  %v726 = vpack.c.b16 %v715, %v714
  %v727 = vpack.c.b16 %v717, %v716
  %v728 = vpack.c.b16 %v719, %v718
  %v729 = vpack.c.b16 %v721, %v720
  %738 = vmatprep.subr.bf16.mxu0 0
  %739 = vmatpush1.bf16.msra.mxu0 %v722
  %740 = vmatprep.subr.bf16.mxu0 0
  %741 = vmatpush1.bf16.msra.mxu0 %v723
  %742 = vmatprep.subr.bf16.mxu0 0
  %743 = vmatpush1.bf16.msra.mxu0 %v724
  %744 = vmatprep.subr.bf16.mxu0 0
  %745 = vmatpush1.bf16.msra.mxu0 %v725
  %746 = vmatprep.subr.bf16.mxu0 0
  %747 = vmatpush1.bf16.msra.mxu0 %v726
  %748 = vmatprep.subr.bf16.mxu0 0
  %749 = vmatpush1.bf16.msra.mxu0 %v727
  %750 = vmatprep.subr.bf16.mxu0 0
  %751 = vmatpush1.bf16.msra.mxu0 %v728
  %752 = vmatprep.subr.bf16.mxu0 0
  %753 = vmatpush1.bf16.msra.mxu0 %v729
  %754 = vmatprep.subr.bf16.mxu0 0
  %755 = vmatpush1.bf16.msra.mxu0 0
  %756 = vmatprep.subr.bf16.mxu0 0
  %757 = vmatpush1.bf16.msra.mxu0 0
  %758 = vmatprep.subr.bf16.mxu0 0
  %759 = vmatpush1.bf16.msra.mxu0 0
  %760 = vmatprep.subr.bf16.mxu0 0
  %761 = vmatpush1.bf16.msra.mxu0 0
  %762 = vmatprep.subr.bf16.mxu0 0
  %763 = vmatpush1.bf16.msra.mxu0 0
  %764 = vmatprep.subr.bf16.mxu0 0
  %765 = vmatpush1.bf16.msra.mxu0 0
  %766 = vmatprep.subr.bf16.mxu0 0
  %767 = vmatpush1.bf16.msra.mxu0 0
  %768 = vmatprep.subr.bf16.mxu0 0
  %769 = vmatpush1.bf16.msra.mxu0 0
  %770 = vmatprep.mubr.bf16.mxu0 0
  %771 = vmatmul.mubr.bf16.gmra.mrb[0].mxu0 %v685
  %v772 = vpop.f32.mrb[0].mxu0
  %v773 = vadd.f32 0.0, %v772
  %v774 = vpop.f32.mrb[0].mxu0
  %v775 = vpop.f32.mrb[0].mxu0
  %v776 = vadd.f32 0.0, %v775
  %v777 = vpop.f32.mrb[0].mxu0
  %778 = vmatprep.mubr.bf16.mxu0 0
  %779 = vmatmul.mubr.bf16.gmra.mrb[0].mxu0 %v687
  %v780 = vpop.f32.mrb[0].mxu0
  %v781 = vadd.f32 0.0, %v780
  %v782 = vpop.f32.mrb[0].mxu0
  %v783 = vpop.f32.mrb[0].mxu0
  %v784 = vpop.f32.mrb[0].mxu0
  %785 = vdwg.mxu0
  %v786 = vadd.f32 %v656, %v773
  %v787 = vadd.f32 %v657, %v776
  %v788 = vadd.f32 %v658, %v781
  %v789 = vld [vmem:[#allocation2] sm:$0xf8]
  %v790 = vld [vmem:[#allocation2 + $0x8] sm:$0x7f]
  %s791 = scalar_lea.vmem %s2, 256
  %v792 = vld [vmem:[%s791] sm:$0xf]
  %v793 = vld [vmem:[%s791 + $0x4] sm:$0xf]
  %v794 = vld [vmem:[%s791 + $0x8] sm:$0xf]
  %v795 = vld [vmem:[%s791 + $0xc] sm:$0xf]
  %v796 = vld [vmem:[%s791 + $0x10] sm:$0xf]
  %v797 = vld [vmem:[%s791 + $0x14] sm:$0xf]
  %v798 = vld [vmem:[%s791 + $0x18] sm:$0xf]
  %v799 = vld [vmem:[%s791 + $0x1c] sm:$0xf]
  %v800 = vld [vmem:[%s791 + $0x20] sm:$0xf]
  %v801 = vld [vmem:[%s791 + $0x24] sm:$0xf]
  %v802 = vld [vmem:[%s791 + $0x28] sm:$0xf]
  %v803 = vld [vmem:[%s791 + $0x2c] sm:$0xf]
  %v804 = vld [vmem:[%s791 + $0x30] sm:$0xf]
  %v805 = vld [vmem:[%s791 + $0x34] sm:$0xf]
  %v806 = vld [vmem:[%s791 + $0x38] sm:$0xf]
  %v807 = vld [vmem:[%s791 + $0x3c] sm:$0xf]
  %vm810 = vcmask 1044480
  %v811 = vrot.slane %v789, 3
  %v812 = vrot.slane %v790, 3
  %v813 = vsel %vm810, %v811, %v812
  %v832 = vunpack.c.l.b16 %v792
  %v833 = vunpack.c.l.b16 %v793
  %v834 = vunpack.c.l.b16 %v794
  %v835 = vunpack.c.l.b16 %v795
  %v836 = vunpack.c.l.b16 %v796
  %v837 = vunpack.c.l.b16 %v797
  %v838 = vunpack.c.l.b16 %v798
  %v839 = vunpack.c.l.b16 %v799
  %v840 = vunpack.c.l.b16 %v800
  %v841 = vunpack.c.l.b16 %v801
  %v842 = vunpack.c.l.b16 %v802
  %v843 = vunpack.c.l.b16 %v803
  %v844 = vunpack.c.l.b16 %v804
  %v845 = vunpack.c.l.b16 %v805
  %v846 = vunpack.c.l.b16 %v806
  %v847 = vunpack.c.l.b16 %v807
  %v848 = vpack.c.b16 %v833, %v832
  %v849 = vpack.c.b16 %v835, %v834
  %v850 = vpack.c.b16 %v837, %v836
  %v851 = vpack.c.b16 %v839, %v838
  %v852 = vpack.c.b16 %v841, %v840
  %v853 = vpack.c.b16 %v843, %v842
  %v854 = vpack.c.b16 %v845, %v844
  %v855 = vpack.c.b16 %v847, %v846
  %864 = vmatprep.subr.bf16.mxu0 0
  %865 = vmatpush1.bf16.msra.mxu0 %v848
  %866 = vmatprep.subr.bf16.mxu0 0
  %867 = vmatpush1.bf16.msra.mxu0 %v849
  %868 = vmatprep.subr.bf16.mxu0 0
  %869 = vmatpush1.bf16.msra.mxu0 %v850
  %870 = vmatprep.subr.bf16.mxu0 0
  %871 = vmatpush1.bf16.msra.mxu0 %v851
  %872 = vmatprep.subr.bf16.mxu0 0
  %873 = vmatpush1.bf16.msra.mxu0 %v852
  %874 = vmatprep.subr.bf16.mxu0 0
  %875 = vmatpush1.bf16.msra.mxu0 %v853
  %876 = vmatprep.subr.bf16.mxu0 0
  %877 = vmatpush1.bf16.msra.mxu0 %v854
  %878 = vmatprep.subr.bf16.mxu0 0
  %879 = vmatpush1.bf16.msra.mxu0 %v855
  %880 = vmatprep.subr.bf16.mxu0 0
  %881 = vmatpush1.bf16.msra.mxu0 0
  %882 = vmatprep.subr.bf16.mxu0 0
  %883 = vmatpush1.bf16.msra.mxu0 0
  %884 = vmatprep.subr.bf16.mxu0 0
  %885 = vmatpush1.bf16.msra.mxu0 0
  %886 = vmatprep.subr.bf16.mxu0 0
  %887 = vmatpush1.bf16.msra.mxu0 0
  %888 = vmatprep.subr.bf16.mxu0 0
  %889 = vmatpush1.bf16.msra.mxu0 0
  %890 = vmatprep.subr.bf16.mxu0 0
  %891 = vmatpush1.bf16.msra.mxu0 0
  %892 = vmatprep.subr.bf16.mxu0 0
  %893 = vmatpush1.bf16.msra.mxu0 0
  %894 = vmatprep.subr.bf16.mxu0 0
  %895 = vmatpush1.bf16.msra.mxu0 0
  %896 = vmatprep.mubr.bf16.mxu0 0
  %897 = vmatmul.mubr.bf16.gmra.mrb[0].mxu0 %v813
  %v898 = vpop.f32.mrb[0].mxu0
  %v899 = vadd.f32 0.0, %v898
  %v900 = vpop.f32.mrb[0].mxu0
  %v901 = vpop.f32.mrb[0].mxu0
  %v902 = vadd.f32 0.0, %v901
  %v903 = vpop.f32.mrb[0].mxu0
  %904 = vmatprep.mubr.bf16.mxu0 0
  %905 = vmatmul.mubr.bf16.gmra.mrb[0].mxu0 %v812
  %v906 = vpop.f32.mrb[0].mxu0
  %v907 = vadd.f32 0.0, %v906
  %v908 = vpop.f32.mrb[0].mxu0
  %v909 = vpop.f32.mrb[0].mxu0
  %v910 = vpop.f32.mrb[0].mxu0
  %911 = vdwg.mxu0
  %v912 = vadd.f32 %v786, %v899
  %v913 = vadd.f32 %v787, %v902
  %v914 = vadd.f32 %v788, %v907
  %v915 = vld [vmem:[#allocation2 + $0x18] sm:$0xf]
  %s916 = scalar_lea.vmem %s2, 320
  %v917 = vld [vmem:[%s916] sm:$0xf]
  %v918 = vld [vmem:[%s916 + $0x4] sm:$0xf]
  %v919 = vld [vmem:[%s916 + $0x8] sm:$0xf]
  %v920 = vld [vmem:[%s916 + $0xc] sm:$0xf]
  %v921 = vld [vmem:[%s916 + $0x10] sm:$0xf]
  %v922 = vld [vmem:[%s916 + $0x14] sm:$0xf]
  %v923 = vld [vmem:[%s916 + $0x18] sm:$0xf]
  %v924 = vld [vmem:[%s916 + $0x1c] sm:$0xf]
  %v925 = vld [vmem:[%s916 + $0x20] sm:$0xf]
  %v926 = vld [vmem:[%s916 + $0x24] sm:$0xf]
  %v927 = vld [vmem:[%s916 + $0x28] sm:$0xf]
  %v928 = vld [vmem:[%s916 + $0x2c] sm:$0xf]
  %v929 = vld [vmem:[%s916 + $0x30] sm:$0xf]
  %v930 = vld [vmem:[%s916 + $0x34] sm:$0xf]
  %v931 = vld [vmem:[%s916 + $0x38] sm:$0xf]
  %v932 = vld [vmem:[%s916 + $0x3c] sm:$0xf]
  %vm933 = vsmask.f32 256
  %v935 = vshrl.u32 %v659, 16
  %v937 = vrot.slane %v935, 7
  %v939 = vshrl.u32 %v660, 16
  %v941 = vrot.slane %v939, 7
  %v942 = vshll.u32 %v660, 16
  %v944 = vor.u32 %v941, %v942
  %v945 = vsel %vm933, %v937, %v944
  %v947 = vshrl.u32 %v915, 16
  %v949 = vrot.slane %v947, 7
  %v950 = vshll.u32 %v915, 16
  %v952 = vor.u32 %v949, %v950
  %v953 = vsel %vm933, %v941, %v952
  %v972 = vunpack.c.l.b16 %v917
  %v973 = vunpack.c.l.b16 %v918
  %v974 = vunpack.c.l.b16 %v919
  %v975 = vunpack.c.l.b16 %v920
  %v976 = vunpack.c.l.b16 %v921
  %v977 = vunpack.c.l.b16 %v922
  %v978 = vunpack.c.l.b16 %v923
  %v979 = vunpack.c.l.b16 %v924
  %v980 = vunpack.c.l.b16 %v925
  %v981 = vunpack.c.l.b16 %v926
  %v982 = vunpack.c.l.b16 %v927
  %v983 = vunpack.c.l.b16 %v928
  %v984 = vunpack.c.l.b16 %v929
  %v985 = vunpack.c.l.b16 %v930
  %v986 = vunpack.c.l.b16 %v931
  %v987 = vunpack.c.l.b16 %v932
  %v988 = vpack.c.b16 %v973, %v972
  %v989 = vpack.c.b16 %v975, %v974
  %v990 = vpack.c.b16 %v977, %v976
  %v991 = vpack.c.b16 %v979, %v978
  %v992 = vpack.c.b16 %v981, %v980
  %v993 = vpack.c.b16 %v983, %v982
  %v994 = vpack.c.b16 %v985, %v984
  %v995 = vpack.c.b16 %v987, %v986
  %1004 = vmatprep.subr.bf16.mxu0 0
  %1005 = vmatpush1.bf16.msra.mxu0 %v988
  %1006 = vmatprep.subr.bf16.mxu0 0
  %1007 = vmatpush1.bf16.msra.mxu0 %v989
  %1008 = vmatprep.subr.bf16.mxu0 0
  %1009 = vmatpush1.bf16.msra.mxu0 %v990
  %1010 = vmatprep.subr.bf16.mxu0 0
  %1011 = vmatpush1.bf16.msra.mxu0 %v991
  %1012 = vmatprep.subr.bf16.mxu0 0
  %1013 = vmatpush1.bf16.msra.mxu0 %v992
  %1014 = vmatprep.subr.bf16.mxu0 0
  %1015 = vmatpush1.bf16.msra.mxu0 %v993
  %1016 = vmatprep.subr.bf16.mxu0 0
  %1017 = vmatpush1.bf16.msra.mxu0 %v994
  %1018 = vmatprep.subr.bf16.mxu0 0
  %1019 = vmatpush1.bf16.msra.mxu0 %v995
  %1020 = vmatprep.subr.bf16.mxu0 0
  %1021 = vmatpush1.bf16.msra.mxu0 0
  %1022 = vmatprep.subr.bf16.mxu0 0
  %1023 = vmatpush1.bf16.msra.mxu0 0
  %1024 = vmatprep.subr.bf16.mxu0 0
  %1025 = vmatpush1.bf16.msra.mxu0 0
  %1026 = vmatprep.subr.bf16.mxu0 0
  %1027 = vmatpush1.bf16.msra.mxu0 0
  %1028 = vmatprep.subr.bf16.mxu0 0
  %1029 = vmatpush1.bf16.msra.mxu0 0
  %1030 = vmatprep.subr.bf16.mxu0 0
  %1031 = vmatpush1.bf16.msra.mxu0 0
  %1032 = vmatprep.subr.bf16.mxu0 0
  %1033 = vmatpush1.bf16.msra.mxu0 0
  %1034 = vmatprep.subr.bf16.mxu0 0
  %1035 = vmatpush1.bf16.msra.mxu0 0
  %1036 = vmatprep.mubr.bf16.mxu0 0
  %1037 = vmatmul.mubr.bf16.gmra.mrb[0].mxu0 %v945
  %v1038 = vpop.f32.mrb[0].mxu0
  %v1039 = vadd.f32 0.0, %v1038
  %v1040 = vpop.f32.mrb[0].mxu0
  %v1041 = vpop.f32.mrb[0].mxu0
  %v1042 = vadd.f32 0.0, %v1041
  %v1043 = vpop.f32.mrb[0].mxu0
  %1044 = vmatprep.mubr.bf16.mxu0 0
  %1045 = vmatmul.mubr.bf16.gmra.mrb[0].mxu0 %v953
  %v1046 = vpop.f32.mrb[0].mxu0
  %v1047 = vadd.f32 0.0, %v1046
  %v1048 = vpop.f32.mrb[0].mxu0
  %v1049 = vpop.f32.mrb[0].mxu0
  %v1050 = vpop.f32.mrb[0].mxu0
  %1051 = vdwg.mxu0
  %v1052 = vadd.f32 %v912, %v1039
  %v1053 = vadd.f32 %v913, %v1042
  %v1054 = vadd.f32 %v914, %v1047
  %v1055 = vld [vmem:[#allocation2 + $0x30] sm:$0xf]
  %s1056 = scalar_lea.vmem %s2, 384
  %v1057 = vld [vmem:[%s1056] sm:$0xf]
  %v1058 = vld [vmem:[%s1056 + $0x4] sm:$0xf]
  %v1059 = vld [vmem:[%s1056 + $0x8] sm:$0xf]
  %v1060 = vld [vmem:[%s1056 + $0xc] sm:$0xf]
  %v1061 = vld [vmem:[%s1056 + $0x10] sm:$0xf]
  %v1062 = vld [vmem:[%s1056 + $0x14] sm:$0xf]
  %v1063 = vld [vmem:[%s1056 + $0x18] sm:$0xf]
  %v1064 = vld [vmem:[%s1056 + $0x1c] sm:$0xf]
  %v1065 = vld [vmem:[%s1056 + $0x20] sm:$0xf]
  %v1066 = vld [vmem:[%s1056 + $0x24] sm:$0xf]
  %v1067 = vld [vmem:[%s1056 + $0x28] sm:$0xf]
  %v1068 = vld [vmem:[%s1056 + $0x2c] sm:$0xf]
  %v1069 = vld [vmem:[%s1056 + $0x30] sm:$0xf]
  %v1070 = vld [vmem:[%s1056 + $0x34] sm:$0xf]
  %v1071 = vld [vmem:[%s1056 + $0x38] sm:$0xf]
  %v1072 = vld [vmem:[%s1056 + $0x3c] sm:$0xf]
  %v1089 = vunpack.c.l.b16 %v1057
  %v1090 = vunpack.c.l.b16 %v1058
  %v1091 = vunpack.c.l.b16 %v1059
  %v1092 = vunpack.c.l.b16 %v1060
  %v1093 = vunpack.c.l.b16 %v1061
  %v1094 = vunpack.c.l.b16 %v1062
  %v1095 = vunpack.c.l.b16 %v1063
  %v1096 = vunpack.c.l.b16 %v1064
  %v1097 = vunpack.c.l.b16 %v1065
  %v1098 = vunpack.c.l.b16 %v1066
  %v1099 = vunpack.c.l.b16 %v1067
  %v1100 = vunpack.c.l.b16 %v1068
  %v1101 = vunpack.c.l.b16 %v1069
  %v1102 = vunpack.c.l.b16 %v1070
  %v1103 = vunpack.c.l.b16 %v1071
  %v1104 = vunpack.c.l.b16 %v1072
  %v1105 = vpack.c.b16 %v1090, %v1089
  %v1106 = vpack.c.b16 %v1092, %v1091
  %v1107 = vpack.c.b16 %v1094, %v1093
  %v1108 = vpack.c.b16 %v1096, %v1095
  %v1109 = vpack.c.b16 %v1098, %v1097
  %v1110 = vpack.c.b16 %v1100, %v1099
  %v1111 = vpack.c.b16 %v1102, %v1101
  %v1112 = vpack.c.b16 %v1104, %v1103
  %1121 = vmatprep.subr.bf16.mxu0 0
  %1122 = vmatpush1.bf16.msra.mxu0 %v1105
  %1123 = vmatprep.subr.bf16.mxu0 0
  %1124 = vmatpush1.bf16.msra.mxu0 %v1106
  %1125 = vmatprep.subr.bf16.mxu0 0
  %1126 = vmatpush1.bf16.msra.mxu0 %v1107
  %1127 = vmatprep.subr.bf16.mxu0 0
  %1128 = vmatpush1.bf16.msra.mxu0 %v1108
  %1129 = vmatprep.subr.bf16.mxu0 0
  %1130 = vmatpush1.bf16.msra.mxu0 %v1109
  %1131 = vmatprep.subr.bf16.mxu0 0
  %1132 = vmatpush1.bf16.msra.mxu0 %v1110
  %1133 = vmatprep.subr.bf16.mxu0 0
  %1134 = vmatpush1.bf16.msra.mxu0 %v1111
  %1135 = vmatprep.subr.bf16.mxu0 0
  %1136 = vmatpush1.bf16.msra.mxu0 %v1112
  %1137 = vmatprep.subr.bf16.mxu0 0
  %1138 = vmatpush1.bf16.msra.mxu0 0
  %1139 = vmatprep.subr.bf16.mxu0 0
  %1140 = vmatpush1.bf16.msra.mxu0 0
  %1141 = vmatprep.subr.bf16.mxu0 0
  %1142 = vmatpush1.bf16.msra.mxu0 0
  %1143 = vmatprep.subr.bf16.mxu0 0
  %1144 = vmatpush1.bf16.msra.mxu0 0
  %1145 = vmatprep.subr.bf16.mxu0 0
  %1146 = vmatpush1.bf16.msra.mxu0 0
  %1147 = vmatprep.subr.bf16.mxu0 0
  %1148 = vmatpush1.bf16.msra.mxu0 0
  %1149 = vmatprep.subr.bf16.mxu0 0
  %1150 = vmatpush1.bf16.msra.mxu0 0
  %1151 = vmatprep.subr.bf16.mxu0 0
  %1152 = vmatpush1.bf16.msra.mxu0 0
  %1153 = vmatprep.mubr.bf16.mxu0 0
  %1154 = vmatmul.mubr.bf16.gmra.mrb[0].mxu0 %v253
  %v1155 = vpop.f32.mrb[0].mxu0
  %v1156 = vadd.f32 0.0, %v1155
  %v1157 = vpop.f32.mrb[0].mxu0
  %v1158 = vpop.f32.mrb[0].mxu0
  %v1159 = vadd.f32 0.0, %v1158
  %v1160 = vpop.f32.mrb[0].mxu0
  %1161 = vmatprep.mubr.bf16.mxu0 0
  %1162 = vmatmul.mubr.bf16.gmra.mrb[0].mxu0 %v1055
  %v1163 = vpop.f32.mrb[0].mxu0
  %v1164 = vadd.f32 0.0, %v1163
  %v1165 = vpop.f32.mrb[0].mxu0
  %v1166 = vpop.f32.mrb[0].mxu0
  %v1167 = vpop.f32.mrb[0].mxu0
  %1168 = vdwg.mxu0
  %v1169 = vadd.f32 %v1052, %v1156
  %v1170 = vadd.f32 %v1053, %v1159
  %v1171 = vadd.f32 %v1054, %v1164
  %v1172 = vld [vmem:[#allocation2 + $0x18] sm:$0xf0]
  %v1173 = vld [vmem:[#allocation2 + $0x20] sm:$0xff]
  %s1174 = scalar_lea.vmem %s2, 448
  %v1175 = vld [vmem:[%s1174] sm:$0xf]
  %v1176 = vld [vmem:[%s1174 + $0x4] sm:$0xf]
  %v1177 = vld [vmem:[%s1174 + $0x8] sm:$0xf]
  %v1178 = vld [vmem:[%s1174 + $0xc] sm:$0xf]
  %v1179 = vld [vmem:[%s1174 + $0x10] sm:$0xf]
  %v1180 = vld [vmem:[%s1174 + $0x14] sm:$0xf]
  %v1181 = vld [vmem:[%s1174 + $0x18] sm:$0xf]
  %v1182 = vld [vmem:[%s1174 + $0x1c] sm:$0xf]
  %v1183 = vld [vmem:[%s1174 + $0x20] sm:$0xf]
  %v1184 = vld [vmem:[%s1174 + $0x24] sm:$0xf]
  %v1185 = vld [vmem:[%s1174 + $0x28] sm:$0xf]
  %v1186 = vld [vmem:[%s1174 + $0x2c] sm:$0xf]
  %v1187 = vld [vmem:[%s1174 + $0x30] sm:$0xf]
  %v1188 = vld [vmem:[%s1174 + $0x34] sm:$0xf]
  %v1189 = vld [vmem:[%s1174 + $0x38] sm:$0xf]
  %v1190 = vld [vmem:[%s1174 + $0x3c] sm:$0xf]
  %vm1193 = vcmask 1043456
  %v1194 = vrot.slane %v1172, 4
  %v1195 = vrot.slane %v1173, 4
  %v1196 = vsel %vm1193, %v1194, %v1195
  %v1215 = vunpack.c.l.b16 %v1175
  %v1216 = vunpack.c.l.b16 %v1176
  %v1217 = vunpack.c.l.b16 %v1177
  %v1218 = vunpack.c.l.b16 %v1178
  %v1219 = vunpack.c.l.b16 %v1179
  %v1220 = vunpack.c.l.b16 %v1180
  %v1221 = vunpack.c.l.b16 %v1181
  %v1222 = vunpack.c.l.b16 %v1182
  %v1223 = vunpack.c.l.b16 %v1183
  %v1224 = vunpack.c.l.b16 %v1184
  %v1225 = vunpack.c.l.b16 %v1185
  %v1226 = vunpack.c.l.b16 %v1186
  %v1227 = vunpack.c.l.b16 %v1187
  %v1228 = vunpack.c.l.b16 %v1188
  %v1229 = vunpack.c.l.b16 %v1189
  %v1230 = vunpack.c.l.b16 %v1190
  %v1231 = vpack.c.b16 %v1216, %v1215
  %v1232 = vpack.c.b16 %v1218, %v1217
  %v1233 = vpack.c.b16 %v1220, %v1219
  %v1234 = vpack.c.b16 %v1222, %v1221
  %v1235 = vpack.c.b16 %v1224, %v1223
  %v1236 = vpack.c.b16 %v1226, %v1225
  %v1237 = vpack.c.b16 %v1228, %v1227
  %v1238 = vpack.c.b16 %v1230, %v1229
  %1247 = vmatprep.subr.bf16.mxu0 0
  %1248 = vmatpush1.bf16.msra.mxu0 %v1231
  %1249 = vmatprep.subr.bf16.mxu0 0
  %1250 = vmatpush1.bf16.msra.mxu0 %v1232
  %1251 = vmatprep.subr.bf16.mxu0 0
  %1252 = vmatpush1.bf16.msra.mxu0 %v1233
  %1253 = vmatprep.subr.bf16.mxu0 0
  %1254 = vmatpush1.bf16.msra.mxu0 %v1234
  %1255 = vmatprep.subr.bf16.mxu0 0
  %1256 = vmatpush1.bf16.msra.mxu0 %v1235
  %1257 = vmatprep.subr.bf16.mxu0 0
  %1258 = vmatpush1.bf16.msra.mxu0 %v1236
  %1259 = vmatprep.subr.bf16.mxu0 0
  %1260 = vmatpush1.bf16.msra.mxu0 %v1237
  %1261 = vmatprep.subr.bf16.mxu0 0
  %1262 = vmatpush1.bf16.msra.mxu0 %v1238
  %1263 = vmatprep.subr.bf16.mxu0 0
  %1264 = vmatpush1.bf16.msra.mxu0 0
  %1265 = vmatprep.subr.bf16.mxu0 0
  %1266 = vmatpush1.bf16.msra.mxu0 0
  %1267 = vmatprep.subr.bf16.mxu0 0
  %1268 = vmatpush1.bf16.msra.mxu0 0
  %1269 = vmatprep.subr.bf16.mxu0 0
  %1270 = vmatpush1.bf16.msra.mxu0 0
  %1271 = vmatprep.subr.bf16.mxu0 0
  %1272 = vmatpush1.bf16.msra.mxu0 0
  %1273 = vmatprep.subr.bf16.mxu0 0
  %1274 = vmatpush1.bf16.msra.mxu0 0
  %1275 = vmatprep.subr.bf16.mxu0 0
  %1276 = vmatpush1.bf16.msra.mxu0 0
  %1277 = vmatprep.subr.bf16.mxu0 0
  %1278 = vmatpush1.bf16.msra.mxu0 0
  %1279 = vmatprep.mubr.bf16.mxu0 0
  %1280 = vmatmul.mubr.bf16.gmra.mrb[0].mxu0 %v1196
  %v1281 = vpop.f32.mrb[0].mxu0
  %v1282 = vadd.f32 0.0, %v1281
  %v1283 = vpop.f32.mrb[0].mxu0
  %v1284 = vpop.f32.mrb[0].mxu0
  %v1285 = vadd.f32 0.0, %v1284
  %v1286 = vpop.f32.mrb[0].mxu0
  %1287 = vmatprep.mubr.bf16.mxu0 0
  %1288 = vmatmul.mubr.bf16.gmra.mrb[0].mxu0 %v1195
  %v1289 = vpop.f32.mrb[0].mxu0
  %v1290 = vadd.f32 0.0, %v1289
  %v1291 = vpop.f32.mrb[0].mxu0
  %v1292 = vpop.f32.mrb[0].mxu0
  %v1293 = vpop.f32.mrb[0].mxu0
  %1294 = vdwg.mxu0
  %v1295 = vadd.f32 %v1169, %v1282
  %v1296 = vadd.f32 %v1170, %v1285
  %v1297 = vadd.f32 %v1171, %v1290
  %v1298 = vld [vmem:[#allocation2 + $0x30] sm:$0x1f]
  %s1299 = scalar_lea.vmem %s2, 512
  %v1300 = vld [vmem:[%s1299] sm:$0xf]
  %v1301 = vld [vmem:[%s1299 + $0x4] sm:$0xf]
  %v1302 = vld [vmem:[%s1299 + $0x8] sm:$0xf]
  %v1303 = vld [vmem:[%s1299 + $0xc] sm:$0xf]
  %v1304 = vld [vmem:[%s1299 + $0x10] sm:$0xf]
  %v1305 = vld [vmem:[%s1299 + $0x14] sm:$0xf]
  %v1306 = vld [vmem:[%s1299 + $0x18] sm:$0xf]
  %v1307 = vld [vmem:[%s1299 + $0x1c] sm:$0xf]
  %v1308 = vld [vmem:[%s1299 + $0x20] sm:$0xf]
  %v1309 = vld [vmem:[%s1299 + $0x24] sm:$0xf]
  %v1310 = vld [vmem:[%s1299 + $0x28] sm:$0xf]
  %v1311 = vld [vmem:[%s1299 + $0x2c] sm:$0xf]
  %v1312 = vld [vmem:[%s1299 + $0x30] sm:$0xf]
  %v1313 = vld [vmem:[%s1299 + $0x34] sm:$0xf]
  %v1314 = vld [vmem:[%s1299 + $0x38] sm:$0xf]
  %v1315 = vld [vmem:[%s1299 + $0x3c] sm:$0xf]
  %vm1316 = vsmask.f32 7424
  %v1317 = vrot.slane %v419, 1
  %v1318 = vor.u32 %v416, %v1317
  %v1320 = vshll.u32 %v1298, 16
  %v1322 = vrot.slane %v1320, 1
  %v1323 = vsel %vm1316, %v1318, %v1322
  %v1324 = vshrl.u32 %v1298, 16
  %v1326 = vor.u32 %v1324, %v1322
  %v1345 = vunpack.c.l.b16 %v1300
  %v1346 = vunpack.c.l.b16 %v1301
  %v1347 = vunpack.c.l.b16 %v1302
  %v1348 = vunpack.c.l.b16 %v1303
  %v1349 = vunpack.c.l.b16 %v1304
  %v1350 = vunpack.c.l.b16 %v1305
  %v1351 = vunpack.c.l.b16 %v1306
  %v1352 = vunpack.c.l.b16 %v1307
  %v1353 = vunpack.c.l.b16 %v1308
  %v1354 = vunpack.c.l.b16 %v1309
  %v1355 = vunpack.c.l.b16 %v1310
  %v1356 = vunpack.c.l.b16 %v1311
  %v1357 = vunpack.c.l.b16 %v1312
  %v1358 = vunpack.c.l.b16 %v1313
  %v1359 = vunpack.c.l.b16 %v1314
  %v1360 = vunpack.c.l.b16 %v1315
  %v1361 = vpack.c.b16 %v1346, %v1345
  %v1362 = vpack.c.b16 %v1348, %v1347
  %v1363 = vpack.c.b16 %v1350, %v1349
  %v1364 = vpack.c.b16 %v1352, %v1351
  %v1365 = vpack.c.b16 %v1354, %v1353
  %v1366 = vpack.c.b16 %v1356, %v1355
  %v1367 = vpack.c.b16 %v1358, %v1357
  %v1368 = vpack.c.b16 %v1360, %v1359
  %1377 = vmatprep.subr.bf16.mxu0 0
  %1378 = vmatpush1.bf16.msra.mxu0 %v1361
  %1379 = vmatprep.subr.bf16.mxu0 0
  %1380 = vmatpush1.bf16.msra.mxu0 %v1362
  %1381 = vmatprep.subr.bf16.mxu0 0
  %1382 = vmatpush1.bf16.msra.mxu0 %v1363
  %1383 = vmatprep.subr.bf16.mxu0 0
  %1384 = vmatpush1.bf16.msra.mxu0 %v1364
  %1385 = vmatprep.subr.bf16.mxu0 0
  %1386 = vmatpush1.bf16.msra.mxu0 %v1365
  %1387 = vmatprep.subr.bf16.mxu0 0
  %1388 = vmatpush1.bf16.msra.mxu0 %v1366
  %1389 = vmatprep.subr.bf16.mxu0 0
  %1390 = vmatpush1.bf16.msra.mxu0 %v1367
  %1391 = vmatprep.subr.bf16.mxu0 0
  %1392 = vmatpush1.bf16.msra.mxu0 %v1368
  %1393 = vmatprep.subr.bf16.mxu0 0
  %1394 = vmatpush1.bf16.msra.mxu0 0
  %1395 = vmatprep.subr.bf16.mxu0 0
  %1396 = vmatpush1.bf16.msra.mxu0 0
  %1397 = vmatprep.subr.bf16.mxu0 0
  %1398 = vmatpush1.bf16.msra.mxu0 0
  %1399 = vmatprep.subr.bf16.mxu0 0
  %1400 = vmatpush1.bf16.msra.mxu0 0
  %1401 = vmatprep.subr.bf16.mxu0 0
  %1402 = vmatpush1.bf16.msra.mxu0 0
  %1403 = vmatprep.subr.bf16.mxu0 0
  %1404 = vmatpush1.bf16.msra.mxu0 0
  %1405 = vmatprep.subr.bf16.mxu0 0
  %1406 = vmatpush1.bf16.msra.mxu0 0
  %1407 = vmatprep.subr.bf16.mxu0 0
  %1408 = vmatpush1.bf16.msra.mxu0 0
  %1409 = vmatprep.mubr.bf16.mxu0 0
  %1410 = vmatmul.mubr.bf16.gmra.mrb[0].mxu0 %v1323
  %v1411 = vpop.f32.mrb[0].mxu0
  %v1412 = vadd.f32 0.0, %v1411
  %v1413 = vpop.f32.mrb[0].mxu0
  %v1414 = vpop.f32.mrb[0].mxu0
  %v1415 = vadd.f32 0.0, %v1414
  %v1416 = vpop.f32.mrb[0].mxu0
  %1417 = vmatprep.mubr.bf16.mxu0 0
  %1418 = vmatmul.mubr.bf16.gmra.mrb[0].mxu0 %v1326
  %v1419 = vpop.f32.mrb[0].mxu0
  %v1420 = vadd.f32 0.0, %v1419
  %v1421 = vpop.f32.mrb[0].mxu0
  %v1422 = vpop.f32.mrb[0].mxu0
  %v1423 = vpop.f32.mrb[0].mxu0
  %1424 = vdwg.mxu0
  %v1425 = vadd.f32 %v1295, %v1412
  %v1426 = vadd.f32 %v1296, %v1415
  %v1427 = vadd.f32 %v1297, %v1420
  %v1428 = vmax.f32 %v1425, 0.0
  %v1429 = vmax.f32 %v1426, 0.0
  %v1430 = vmax.f32 %v1427, 0.0
  %1431 = vst [vmem:[%s3] sm:$0xff] %v1428
  %1432 = vst [vmem:[%s3 + $0x8] sm:$0xff] %v1429
  %1433 = vst [vmem:[%s3 + $0x10] sm:$0xff] %v1430
  // Predicated region
  $region14: #{forward.1} parent=0 // pred_check
    _
  $region15: #{forward.1} parent=0 // pred_check_branch
    %1435 = sbr.rel (0) target = $region17
  $region16: #{forward.1} parent=0 // pred_region
    _
  $region17: #{forward.1} parent=0 // pred_fallthru
    _
  // Predicated region
  $region18: #{forward.1} parent=0 // pred_check
    _
  $region19: #{forward.1} parent=0 // pred_check_branch
    %1437 = sbr.rel (0) target = $region21
  $region20: #{forward.1} parent=0 // pred_region
    _
  $region21: #{forward.1} parent=0 // pred_fallthru
    _

</llo_original>
